<compile_context>
chip_gen: v6e
topology: v6e:2x2x1
jax: 0.10.0
libtpu: 0.0.40
codegen_flags: <defaults>
</compile_context>

<pallas_src>
import functools

import numpy as np

import jax
import jax.numpy as jnp
from jax.experimental import pallas as pl
from jax.experimental.pallas import tpu as pltpu


def _dense_block_kernel(w_ref, mask_ref, x_ref, o_ref, *,
                        N, Cin, Cout, H, W, KH, KW):
    """Single invocation (no grid).

    w_ref    : VMEM (N*Cout, KH*KW*N*Cin) f32  block-diag-over-images conv weight
    mask_ref : VMEM (KH*KW, H*W) f32           border-validity mask per tap
    x_ref    : VMEM (N*Cin, H*W) f32           NCHW input, H,W merged (lane-dense)
    o_ref    : VMEM (N*(Cin+Cout), H*W) f32    concat([x, relu(conv(x))]) in NCHW
    """
    HW = H * W
    Ctot = Cin + Cout

    x = x_ref[...]                                   # (N*Cin, HW)

    # 9 shifted + border-masked copies of x, stacked along sublanes into one
    # (KH*KW*N*Cin, HW) matmul operand.  A spatial shift (dh, dw) is a lane
    # rotation by dh*W + dw on the flattened H*W axis (XLU slot); taps that
    # fall outside the image are zeroed by the precomputed mask row (one VPU
    # mul), which replaces the conv's explicit zero padding.  Each tap piece is
    # N*Cin = 8 rows, i.e. a full sublane group, so the concatenate is
    # alignment-free.
    taps = []
    for kh in range(KH):
        dh = kh - 1                                  # padding = 1
        for kw in range(KW):
            dw = kw - 1
            t = kh * KW + kw
            s = dh * W + dw
            shifted = x if s == 0 else pltpu.roll(x, shift=(-s) % HW, axis=1)
            if dh == 0 and dw == 0:
                taps.append(shifted)                 # interior tap: mask == 1
            else:
                taps.append(shifted * mask_ref[t:t + 1, :])
    tap_slab = jnp.concatenate(taps, axis=0)         # (KH*KW*N*Cin, HW)

    # 3x3 conv for the whole batch as ONE dense f32 contraction, then ReLU.
    ft = jnp.dot(w_ref[...], tap_slab,
                 preferred_element_type=jnp.float32)          # (N*Cout, HW)
    ft = jnp.maximum(ft, 0.0).astype(o_ref.dtype)

    # Direct, 256-lane-wide sublane-slice stores (no output concatenate):
    # pass-through x rows, then the new feature rows, per image.
    for n in range(N):
        o_ref[n * Ctot:n * Ctot + Cin, :] = (
            x[n * Cin:(n + 1) * Cin, :].astype(o_ref.dtype))
        o_ref[n * Ctot + Cin:(n + 1) * Ctot, :] = ft[n * Cout:(n + 1) * Cout, :]


def dense_block(x_nchw, weight_oihw):
    """x_nchw: (N, Cin, H, W) f32; weight_oihw: (Cout, Cin, KH, KW) (PyTorch OIHW).

    Returns (N, Cin+Cout, H, W), matching the PyTorch module's forward.
    """
    N, Cin, H, W = x_nchw.shape
    Cout, Cin_w, KH, KW = weight_oihw.shape
    assert Cin == Cin_w
    # The module hard-codes padding=1; only kernel_size=3 gives a same-size conv.
    assert KH == 3 and KW == 3, "padding=1 implies kernel_size=3 for same-size output"

    HW = H * W
    T = KH * KW
    Ctot = Cin + Cout

    # Free trailing-dim reshape only: no transpose, no pad, no extra HBM pass.
    x2d = x_nchw.reshape(N * Cin, HW)

    # Block-diagonal (over images) weight so the whole batch is one dot:
    #   w_big[n*Cout + co, t*N*Cin + m*Cin + ci] = weight[co, ci, kh, kw] * (n == m)
    # matching the tap_slab row layout t*N*Cin + n*Cin + ci built in the kernel.
    w_taps = jnp.transpose(weight_oihw, (2, 3, 1, 0)).reshape(T, Cin, Cout)
    eye_n = jnp.eye(N, dtype=weight_oihw.dtype)
    w_big = jnp.einsum('tic,nm->nctmi', w_taps, eye_n).reshape(N * Cout, T * N * Cin)

    # Precomputed border-validity masks (one f32 row per tap); replaces the
    # previous in-kernel compare/and/select chain and the coords input.
    hh = np.repeat(np.arange(H), W)
    ww = np.tile(np.arange(W), H)
    masks_np = np.zeros((T, HW), np.float32)
    for kh in range(KH):
        for kw in range(KW):
            dh, dw = kh - 1, kw - 1
            valid = ((hh + dh >= 0) & (hh + dh < H) &
                     (ww + dw >= 0) & (ww + dw < W))
            masks_np[kh * KW + kw] = valid.astype(np.float32)
    masks = jnp.asarray(masks_np)

    kernel = functools.partial(_dense_block_kernel, N=N, Cin=Cin, Cout=Cout,
                               H=H, W=W, KH=KH, KW=KW)

    out2d = pl.pallas_call(
        kernel,
        out_shape=jax.ShapeDtypeStruct((N * Ctot, HW), x_nchw.dtype),
        in_specs=[
            pl.BlockSpec(memory_space=pltpu.MemorySpace.VMEM),    # w_big
            pl.BlockSpec(memory_space=pltpu.MemorySpace.VMEM),    # masks
            pl.BlockSpec(memory_space=pltpu.MemorySpace.VMEM),    # x
        ],
        out_specs=pl.BlockSpec(memory_space=pltpu.MemorySpace.VMEM),
    )(w_big, masks, x2d)

    return out2d.reshape(N, Ctot, H, W)


def _reference(x_nchw, weight_oihw):
    ft = jax.lax.conv_general_dilated(
        x_nchw, weight_oihw,
        window_strides=(1, 1),
        padding=((1, 1), (1, 1)),
        dimension_numbers=("NCHW", "OIHW", "NCHW"),
        precision=jax.lax.Precision.HIGHEST)
    ft = jnp.maximum(ft, 0.0)
    return jnp.concatenate([x_nchw, ft], axis=1)


if __name__ == "__main__":
    # Small shapes consistent with the module: batch=2, outChannels(=Cin)=4,
    # growth_rate=4, kernel_size=3, spatial=16x16.
    N, Cin, H, W = 2, 4, 16, 16
    growth_rate, ksize = 4, 3

    key = jax.random.PRNGKey(0)
    kx, kw = jax.random.split(key)
    x = jax.random.normal(kx, (N, Cin, H, W), dtype=jnp.float32)
    fan_in = Cin * ksize * ksize
    weight = jax.random.normal(kw, (growth_rate, Cin, ksize, ksize),
                               dtype=jnp.float32) * (2.0 / fan_in) ** 0.5

    out = jax.block_until_ready(dense_block(x, weight))

    ref = _reference(x, weight)
    assert out.shape == (N, Cin + growth_rate, H, W)
    assert jnp.allclose(out, ref, atol=1e-4, rtol=1e-4)

    print("KERNEL_OK")
</pallas_src>

<mosaic_0001>
module attributes {stable_mosaic.version = 11 : i64} {
  func.func @_dense_block_kernel(%arg0: memref<8x72xf32, #tpu.memory_space<vmem>>, %arg1: memref<9x256xf32, #tpu.memory_space<vmem>>, %arg2: memref<8x256xf32, #tpu.memory_space<vmem>>, %arg3: memref<16x256xf32, #tpu.memory_space<vmem>>) attributes {dimension_semantics = [], scalar_prefetch = 0 : i64, scratch_operands = 0 : i64, tpu.core_type = #tpu.core_type<tc>} {
    %c0 = arith.constant 0 : index
    %c0_0 = arith.constant 0 : index
    %0 = vector.load %arg2[%c0, %c0_0] : memref<8x256xf32, #tpu.memory_space<vmem>>, vector<8x256xf32>
    %c17_i32 = arith.constant 17 : i32
    %1 = tpu.dynamic_rotate %0 by %c17_i32 dim 1 : vector<8x256xf32>, i32 -> vector<8x256xf32>
    %c0_1 = arith.constant 0 : index
    %c0_2 = arith.constant 0 : index
    %2 = vector.load %arg1[%c0_1, %c0_2] : memref<9x256xf32, #tpu.memory_space<vmem>>, vector<1x256xf32>
    %3 = vector.broadcast %2 : vector<1x256xf32> to vector<8x256xf32>
    %4 = arith.mulf %1, %3 : vector<8x256xf32>
    %c16_i32 = arith.constant 16 : i32
    %5 = tpu.dynamic_rotate %0 by %c16_i32 dim 1 : vector<8x256xf32>, i32 -> vector<8x256xf32>
    %c1 = arith.constant 1 : index
    %c0_3 = arith.constant 0 : index
    %6 = vector.load %arg1[%c1, %c0_3] : memref<9x256xf32, #tpu.memory_space<vmem>>, vector<1x256xf32>
    %7 = vector.broadcast %6 : vector<1x256xf32> to vector<8x256xf32>
    %8 = arith.mulf %5, %7 : vector<8x256xf32>
    %c15_i32 = arith.constant 15 : i32
    %9 = tpu.dynamic_rotate %0 by %c15_i32 dim 1 : vector<8x256xf32>, i32 -> vector<8x256xf32>
    %c2 = arith.constant 2 : index
    %c0_4 = arith.constant 0 : index
    %10 = vector.load %arg1[%c2, %c0_4] : memref<9x256xf32, #tpu.memory_space<vmem>>, vector<1x256xf32>
    %11 = vector.broadcast %10 : vector<1x256xf32> to vector<8x256xf32>
    %12 = arith.mulf %9, %11 : vector<8x256xf32>
    %c1_i32 = arith.constant 1 : i32
    %13 = tpu.dynamic_rotate %0 by %c1_i32 dim 1 : vector<8x256xf32>, i32 -> vector<8x256xf32>
    %c3 = arith.constant 3 : index
    %c0_5 = arith.constant 0 : index
    %14 = vector.load %arg1[%c3, %c0_5] : memref<9x256xf32, #tpu.memory_space<vmem>>, vector<1x256xf32>
    %15 = vector.broadcast %14 : vector<1x256xf32> to vector<8x256xf32>
    %16 = arith.mulf %13, %15 : vector<8x256xf32>
    %c255_i32 = arith.constant 255 : i32
    %17 = tpu.dynamic_rotate %0 by %c255_i32 dim 1 : vector<8x256xf32>, i32 -> vector<8x256xf32>
    %c5 = arith.constant 5 : index
    %c0_6 = arith.constant 0 : index
    %18 = vector.load %arg1[%c5, %c0_6] : memref<9x256xf32, #tpu.memory_space<vmem>>, vector<1x256xf32>
    %19 = vector.broadcast %18 : vector<1x256xf32> to vector<8x256xf32>
    %20 = arith.mulf %17, %19 : vector<8x256xf32>
    %c241_i32 = arith.constant 241 : i32
    %21 = tpu.dynamic_rotate %0 by %c241_i32 dim 1 : vector<8x256xf32>, i32 -> vector<8x256xf32>
    %c6 = arith.constant 6 : index
    %c0_7 = arith.constant 0 : index
    %22 = vector.load %arg1[%c6, %c0_7] : memref<9x256xf32, #tpu.memory_space<vmem>>, vector<1x256xf32>
    %23 = vector.broadcast %22 : vector<1x256xf32> to vector<8x256xf32>
    %24 = arith.mulf %21, %23 : vector<8x256xf32>
    %c240_i32 = arith.constant 240 : i32
    %25 = tpu.dynamic_rotate %0 by %c240_i32 dim 1 : vector<8x256xf32>, i32 -> vector<8x256xf32>
    %c7 = arith.constant 7 : index
    %c0_8 = arith.constant 0 : index
    %26 = vector.load %arg1[%c7, %c0_8] : memref<9x256xf32, #tpu.memory_space<vmem>>, vector<1x256xf32>
    %27 = vector.broadcast %26 : vector<1x256xf32> to vector<8x256xf32>
    %28 = arith.mulf %25, %27 : vector<8x256xf32>
    %c239_i32 = arith.constant 239 : i32
    %29 = tpu.dynamic_rotate %0 by %c239_i32 dim 1 : vector<8x256xf32>, i32 -> vector<8x256xf32>
    %c8 = arith.constant 8 : index
    %c0_9 = arith.constant 0 : index
    %30 = vector.load %arg1[%c8, %c0_9] : memref<9x256xf32, #tpu.memory_space<vmem>>, vector<1x256xf32>
    %31 = vector.broadcast %30 : vector<1x256xf32> to vector<8x256xf32>
    %32 = arith.mulf %29, %31 : vector<8x256xf32>
    %33 = tpu.concatenate %4, %8, %12, %16, %0, %20, %24, %28, %32 in 0 : vector<8x256xf32>, vector<8x256xf32>, vector<8x256xf32>, vector<8x256xf32>, vector<8x256xf32>, vector<8x256xf32>, vector<8x256xf32>, vector<8x256xf32>, vector<8x256xf32> -> vector<72x256xf32>
    %c0_10 = arith.constant 0 : index
    %c0_11 = arith.constant 0 : index
    %34 = vector.load %arg0[%c0_10, %c0_11] : memref<8x72xf32, #tpu.memory_space<vmem>>, vector<8x72xf32>
    %cst = arith.constant dense<0.000000e+00> : vector<8x256xf32>
    %35 = tpu.matmul %34, %33, %cst {dimension_numbers = #tpu.dot_dimension_numbers<[1], [0], [0], [1], [0, 0, 1, 1], [], []>} : vector<8x72xf32>, vector<72x256xf32>, vector<8x256xf32> -> vector<8x256xf32>
    %cst_12 = arith.constant 0.000000e+00 : f32
    %36 = vector.broadcast %cst_12 : f32 to vector<8x256xf32>
    %37 = arith.maximumf %35, %36 : vector<8x256xf32>
    %38 = vector.extract_strided_slice %0 {offsets = [0, 0], sizes = [4, 256], strides = [1, 1]} : vector<8x256xf32> to vector<4x256xf32>
    %c0_13 = arith.constant 0 : index
    %c0_14 = arith.constant 0 : index
    %39 = vector.load %arg3[%c0_13, %c0_14] : memref<16x256xf32, #tpu.memory_space<vmem>>, vector<4x256xf32>
    tpu.vector_store %arg3[%c0_13, %c0_14], %38 {strides = array<i32>} : memref<16x256xf32, #tpu.memory_space<vmem>>, vector<4x256xf32>,
    %40 = vector.extract_strided_slice %37 {offsets = [0, 0], sizes = [4, 256], strides = [1, 1]} : vector<8x256xf32> to vector<4x256xf32>
    %c4 = arith.constant 4 : index
    %c0_15 = arith.constant 0 : index
    %41 = vector.load %arg3[%c4, %c0_15] : memref<16x256xf32, #tpu.memory_space<vmem>>, vector<4x256xf32>
    tpu.vector_store %arg3[%c4, %c0_15], %40 {strides = array<i32>} : memref<16x256xf32, #tpu.memory_space<vmem>>, vector<4x256xf32>,
    %42 = vector.extract_strided_slice %0 {offsets = [4, 0], sizes = [4, 256], strides = [1, 1]} : vector<8x256xf32> to vector<4x256xf32>
    %c8_16 = arith.constant 8 : index
    %c0_17 = arith.constant 0 : index
    %43 = vector.load %arg3[%c8_16, %c0_17] : memref<16x256xf32, #tpu.memory_space<vmem>>, vector<4x256xf32>
    tpu.vector_store %arg3[%c8_16, %c0_17], %42 {strides = array<i32>} : memref<16x256xf32, #tpu.memory_space<vmem>>, vector<4x256xf32>,
    %44 = vector.extract_strided_slice %37 {offsets = [4, 0], sizes = [4, 256], strides = [1, 1]} : vector<8x256xf32> to vector<4x256xf32>
    %c12 = arith.constant 12 : index
    %c0_18 = arith.constant 0 : index
    %45 = vector.load %arg3[%c12, %c0_18] : memref<16x256xf32, #tpu.memory_space<vmem>>, vector<4x256xf32>
    tpu.vector_store %arg3[%c12, %c0_18], %44 {strides = array<i32>} : memref<16x256xf32, #tpu.memory_space<vmem>>, vector<4x256xf32>,
    return
  }
}

</mosaic_0001>

<llo_original>
// kernel: tpu_custom_call.1
$region0: #{tpu_custom_call.1}
  #allocation0 [shape = 'u32[]', space=smem, size = 0x4, offset = 0x4, fixed_abs, tag = 'smem constant byte address 0x4 - core index']
  #allocation1 [shape = 'u32[144,128]{1,0:T(1,128)}', space=vmem, size = 0x12000, scoped, tag = 'internal scratch']
  %s0 = inlined_call_operand.hbm [shape: f32[8,72], index: 0, kind: input, shape index: {}]
  %s1 = inlined_call_operand.hbm [shape: f32[9,256], index: 1, kind: input, shape index: {}]
  %s2 = inlined_call_operand.hbm [shape: f32[8,256], index: 2, kind: input, shape index: {}]
  %s3 = inlined_call_operand.hbm [shape: f32[16,256], index: 3, kind: output, shape index: {}]
  %s4 = sld [smem:[#allocation0]]
  $region34: #{tpu_custom_call.1} parent=0
    _
  %s6 = ssub.s32 1, %s4
  %s7 = scalar_select 0, %s6, %s4
  $region1: #{tpu_custom_call.1} parent=0
    #allocation2 [shape = 'u8[4096]{0}', space=vmem, size = 0x1000, scoped, tag = 'input window, operand 0, single buffered']
    #allocation3 [shape = 's32[1]{0}', space=sflag, size = 0x4, scoped, tag = 'scoped memory for tpu_custom_call.1']
    #allocation4 [shape = 's32[1]{0}', space=sflag, size = 0x4, scoped, tag = 'scoped memory for tpu_custom_call.1']
    #allocation5 [shape = 'u8[16384]{0}', space=vmem, size = 0x4000, scoped, tag = 'input window, operand 1, single buffered']
    #allocation6 [shape = 's32[1]{0}', space=sflag, size = 0x4, scoped, tag = 'scoped memory for tpu_custom_call.1']
    #allocation7 [shape = 'u8[8192]{0}', space=vmem, size = 0x2000, scoped, tag = 'input window, operand 2, single buffered']
    #allocation8 [shape = 'u8[16384]{0}', space=vmem, size = 0x4000, scoped, tag = 'output window, operand 0, single buffered']
    %8 = vsyncpa [#allocation3], 0
    %9 = vsyncpa [#allocation6], 0
    %10 = vsyncpa [#allocation4], 0
    // Predicated region
    $region2: #{tpu_custom_call.1} parent=1 // pred_check
      _
    $region3: #{tpu_custom_call.1} parent=1 // pred_check_branch
      %12 = sbr.rel (0) target = $region5
    $region4: #{tpu_custom_call.1} parent=1 // pred_region
      %s14 = ssub.s32 128, 128
      %15 = vsyncadd [#allocation3], %s14
      %s17 = sshll.u32 [#allocation2], 4
      %s18 = int_to_ptr.vmem [resolvable:$true] %s17
      %20 = dma.hbm_to_vmem [thread:$0]  %s0, 128, %s18, [#allocation3]
    $region5: #{tpu_custom_call.1} parent=1 // pred_fallthru
      _
    // Predicated region
    $region6: #{tpu_custom_call.1} parent=1 // pred_check
      _
    $region7: #{tpu_custom_call.1} parent=1 // pred_check_branch
      %22 = sbr.rel (0) target = $region9
    $region8: #{tpu_custom_call.1} parent=1 // pred_region
      %s24 = ssub.s32 512, 512
      %25 = vsyncadd [#allocation6], %s24
      %s26 = sshll.u32 [#allocation5], 4
      %s27 = int_to_ptr.vmem [resolvable:$true] %s26
      %32 = dma.hbm_to_vmem [thread:$0]  %s1, 512, %s27, [#allocation6], 256, 256, 16
    $region9: #{tpu_custom_call.1} parent=1 // pred_fallthru
      _
    // Predicated region
    $region10: #{tpu_custom_call.1} parent=1 // pred_check
      _
    $region11: #{tpu_custom_call.1} parent=1 // pred_check_branch
      %34 = sbr.rel (0) target = $region13
    $region12: #{tpu_custom_call.1} parent=1 // pred_region
      %s36 = ssub.s32 256, 256
      %37 = vsyncadd [#allocation6], %s36
      %s39 = sshll.u32 [#allocation7], 4
      %s40 = int_to_ptr.vmem [resolvable:$true] %s39
      %42 = dma.hbm_to_vmem [thread:$0]  %s2, 256, %s40, [#allocation6]
    $region13: #{tpu_custom_call.1} parent=1 // pred_fallthru
      _
    // Predicated region
    $region14: #{tpu_custom_call.1} parent=1 // pred_check
      _
    $region15: #{tpu_custom_call.1} parent=1 // pred_check_branch
      %44 = sbr.rel (0) target = $region17
    $region16: #{tpu_custom_call.1} parent=1 // pred_region
      %45 = dma.done [#allocation3], 128
    $region17: #{tpu_custom_call.1} parent=1 // pred_fallthru
      _
    // Predicated region
    $region18: #{tpu_custom_call.1} parent=1 // pred_check
      _
    $region19: #{tpu_custom_call.1} parent=1 // pred_check_branch
      %47 = sbr.rel (0) target = $region21
    $region20: #{tpu_custom_call.1} parent=1 // pred_region
      %48 = dma.done [#allocation6], 512
    $region21: #{tpu_custom_call.1} parent=1 // pred_fallthru
      _
    // Predicated region
    $region22: #{tpu_custom_call.1} parent=1 // pred_check
      _
    $region23: #{tpu_custom_call.1} parent=1 // pred_check_branch
      %50 = sbr.rel (0) target = $region25
    $region24: #{tpu_custom_call.1} parent=1 // pred_region
      %51 = dma.done [#allocation6], 256
    $region25: #{tpu_custom_call.1} parent=1 // pred_fallthru
      _
    %v52 = vld [vmem:[#allocation7] sm:$0xff]
    %v53 = vld [vmem:[#allocation7 + $0x8] sm:$0xff]
    %54 = vrot.lane.b32.xlu0 %v52, 17
    %v55 = vpop.permute.xlu0 %54
    %56 = vrot.lane.b32.xlu0 %v53, 17
    %v57 = vpop.permute.xlu0 %56
    %v58 = vlaneseq
    %v59 = vand.u32 %v58, 127
    %vm60 = vcmp.lt.s32.totalorder %v59, 17
    %v61 = vsel %vm60, %v55, %v57
    %v62 = vsel %vm60, %v57, %v55
    %v63 = vld [vmem:[#allocation5] ss:$8 sm:$0x3]
    %v65 = vlaneseq
    %v66 = vshrl.u32 %v65, 7
    %v67 = vsub.s32 0, %v66
    %v68 = vrot.slane %v63, %v67
    %v69 = vlaneseq
    %v70 = vshrl.u32 %v69, 7
    %v71 = vsub.s32 1, %v70
    %v72 = vrot.slane %v63, %v71
    %v75 = vmul.f32 %v62, %v68
    %v76 = vmul.f32 %v61, %v72
    %77 = vrot.lane.b32.xlu0 %v52, 16
    %v78 = vpop.permute.xlu0 %77
    %79 = vrot.lane.b32.xlu0 %v53, 16
    %v80 = vpop.permute.xlu0 %79
    %vm81 = vcmp.lt.s32.totalorder %v59, 16
    %v82 = vsel %vm81, %v78, %v80
    %v83 = vsel %vm81, %v80, %v78
    %s84 = scalar_lea.vmem [#allocation5], 1
    %v85 = vld [vmem:[%s84] ss:$8 sm:$0x3]
    %v87 = vlaneseq
    %v88 = vshrl.u32 %v87, 7
    %v89 = vsub.s32 0, %v88
    %v90 = vrot.slane %v85, %v89
    %v91 = vlaneseq
    %v92 = vshrl.u32 %v91, 7
    %v93 = vsub.s32 1, %v92
    %v94 = vrot.slane %v85, %v93
    %v97 = vmul.f32 %v83, %v90
    %v98 = vmul.f32 %v82, %v94
    %99 = vrot.lane.b32.xlu0 %v52, 15
    %v100 = vpop.permute.xlu0 %99
    %101 = vrot.lane.b32.xlu0 %v53, 15
    %v102 = vpop.permute.xlu0 %101
    %vm103 = vcmp.lt.s32.totalorder %v59, 15
    %v104 = vsel %vm103, %v100, %v102
    %v105 = vsel %vm103, %v102, %v100
    %s106 = scalar_lea.vmem [#allocation5], 2
    %v107 = vld [vmem:[%s106] ss:$8 sm:$0x3]
    %v109 = vlaneseq
    %v110 = vshrl.u32 %v109, 7
    %v111 = vsub.s32 0, %v110
    %v112 = vrot.slane %v107, %v111
    %v113 = vlaneseq
    %v114 = vshrl.u32 %v113, 7
    %v115 = vsub.s32 1, %v114
    %v116 = vrot.slane %v107, %v115
    %v119 = vmul.f32 %v105, %v112
    %v120 = vmul.f32 %v104, %v116
    %121 = vrot.lane.b32.xlu0 %v52, 1
    %v122 = vpop.permute.xlu0 %121
    %123 = vrot.lane.b32.xlu0 %v53, 1
    %v124 = vpop.permute.xlu0 %123
    %vm125 = vcmp.lt.s32.totalorder %v59, 1
    %v126 = vsel %vm125, %v122, %v124
    %v127 = vsel %vm125, %v124, %v122
    %s128 = scalar_lea.vmem [#allocation5], 3
    %v129 = vld [vmem:[%s128] ss:$8 sm:$0x3]
    %v131 = vlaneseq
    %v132 = vshrl.u32 %v131, 7
    %v133 = vsub.s32 0, %v132
    %v134 = vrot.slane %v129, %v133
    %v135 = vlaneseq
    %v136 = vshrl.u32 %v135, 7
    %v137 = vsub.s32 1, %v136
    %v138 = vrot.slane %v129, %v137
    %v141 = vmul.f32 %v127, %v134
    %v142 = vmul.f32 %v126, %v138
    %143 = vrot.lane.b32.xlu0 %v52, 127
    %v144 = vpop.permute.xlu0 %143
    %145 = vrot.lane.b32.xlu0 %v53, 127
    %v146 = vpop.permute.xlu0 %145
    %vm147 = vcmp.lt.s32.totalorder %v59, 127
    %v148 = vsel %vm147, %v144, %v146
    %v149 = vsel %vm147, %v146, %v144
    %s150 = scalar_lea.vmem [#allocation5], 5
    %v151 = vld [vmem:[%s150] ss:$8 sm:$0x3]
    %v153 = vlaneseq
    %v154 = vshrl.u32 %v153, 7
    %v155 = vsub.s32 0, %v154
    %v156 = vrot.slane %v151, %v155
    %v157 = vlaneseq
    %v158 = vshrl.u32 %v157, 7
    %v159 = vsub.s32 1, %v158
    %v160 = vrot.slane %v151, %v159
    %v163 = vmul.f32 %v148, %v156
    %v164 = vmul.f32 %v149, %v160
    %165 = vrot.lane.b32.xlu0 %v52, 113
    %v166 = vpop.permute.xlu0 %165
    %167 = vrot.lane.b32.xlu0 %v53, 113
    %v168 = vpop.permute.xlu0 %167
    %vm169 = vcmp.lt.s32.totalorder %v59, 113
    %v170 = vsel %vm169, %v166, %v168
    %v171 = vsel %vm169, %v168, %v166
    %s172 = scalar_lea.vmem [#allocation5], 6
    %v173 = vld [vmem:[%s172] ss:$8 sm:$0x3]
    %v175 = vlaneseq
    %v176 = vshrl.u32 %v175, 7
    %v177 = vsub.s32 0, %v176
    %v178 = vrot.slane %v173, %v177
    %v179 = vlaneseq
    %v180 = vshrl.u32 %v179, 7
    %v181 = vsub.s32 1, %v180
    %v182 = vrot.slane %v173, %v181
    %v185 = vmul.f32 %v170, %v178
    %v186 = vmul.f32 %v171, %v182
    %187 = vrot.lane.b32.xlu0 %v52, 112
    %v188 = vpop.permute.xlu0 %187
    %189 = vrot.lane.b32.xlu0 %v53, 112
    %v190 = vpop.permute.xlu0 %189
    %vm191 = vcmp.lt.s32.totalorder %v59, 112
    %v192 = vsel %vm191, %v188, %v190
    %v193 = vsel %vm191, %v190, %v188
    %s194 = scalar_lea.vmem [#allocation5], 7
    %v195 = vld [vmem:[%s194] ss:$8 sm:$0x3]
    %v197 = vlaneseq
    %v198 = vshrl.u32 %v197, 7
    %v199 = vsub.s32 0, %v198
    %v200 = vrot.slane %v195, %v199
    %v201 = vlaneseq
    %v202 = vshrl.u32 %v201, 7
    %v203 = vsub.s32 1, %v202
    %v204 = vrot.slane %v195, %v203
    %v207 = vmul.f32 %v192, %v200
    %v208 = vmul.f32 %v193, %v204
    %209 = vrot.lane.b32.xlu0 %v52, 111
    %v210 = vpop.permute.xlu0 %209
    %211 = vrot.lane.b32.xlu0 %v53, 111
    %v212 = vpop.permute.xlu0 %211
    %vm213 = vcmp.lt.s32.totalorder %v59, 111
    %v214 = vsel %vm213, %v210, %v212
    %v215 = vsel %vm213, %v212, %v210
    %s216 = scalar_lea.vmem [#allocation5], 16
    %v217 = vld [vmem:[%s216] ss:$8 sm:$0x3]
    %v219 = vlaneseq
    %v220 = vshrl.u32 %v219, 7
    %v221 = vsub.s32 0, %v220
    %v222 = vrot.slane %v217, %v221
    %v223 = vlaneseq
    %v224 = vshrl.u32 %v223, 7
    %v225 = vsub.s32 1, %v224
    %v226 = vrot.slane %v217, %v225
    %v229 = vmul.f32 %v214, %v222
    %v230 = vmul.f32 %v215, %v226
    %v231 = vld [vmem:[#allocation2] sm:$0xff]
    %vm232 = vcmask 588800
    %v234 = vsel %vm232, %v231, 0
    %236 = vmatprep.subr.mxu0 0.0
    %237 = vmatpush1.msra.mxu0 0.0
    %238 = vmatprep.subr.mxu0 0.0
    %239 = vmatpush1.msra.mxu0 0.0
    %240 = vmatprep.subr.mxu0 0.0
    %241 = vmatpush1.msra.mxu0 0.0
    %242 = vmatprep.subr.mxu0 0.0
    %243 = vmatpush1.msra.mxu0 0.0
    %244 = vmatprep.subr.mxu0 0.0
    %245 = vmatpush1.msra.mxu0 0.0
    %246 = vmatprep.subr.mxu0 0.0
    %247 = vmatpush1.msra.mxu0 0.0
    %248 = vmatprep.subr.mxu0 0.0
    %249 = vmatpush1.msra.mxu0 0.0
    %250 = vmatprep.subr.mxu0 %v230
    %251 = vmatpush1.msra.mxu0 %v229
    %252 = vmatprep.subr.mxu0 %v208
    %253 = vmatpush1.msra.mxu0 %v207
    %254 = vmatprep.subr.mxu0 %v186
    %255 = vmatpush1.msra.mxu0 %v185
    %256 = vmatprep.subr.mxu0 %v164
    %257 = vmatpush1.msra.mxu0 %v163
    %258 = vmatprep.subr.mxu0 %v53
    %259 = vmatpush1.msra.mxu0 %v52
    %260 = vmatprep.subr.mxu0 %v142
    %261 = vmatpush1.msra.mxu0 %v141
    %262 = vmatprep.subr.mxu0 %v120
    %263 = vmatpush1.msra.mxu0 %v119
    %264 = vmatprep.subr.mxu0 %v98
    %265 = vmatpush1.msra.mxu0 %v97
    %266 = vmatprep.subr.mxu0 %v76
    %267 = vmatpush1.msra.mxu0 %v75
    %268 = vmatprep.subr.mxu0 0.0
    %269 = vmatpush2.msra.mxu0 0.0
    %270 = vmatprep.subr.mxu0 0.0
    %271 = vmatpush2.msra.mxu0 0.0
    %272 = vmatprep.subr.mxu0 0.0
    %273 = vmatpush2.msra.mxu0 0.0
    %274 = vmatprep.subr.mxu0 0.0
    %275 = vmatpush2.msra.mxu0 0.0
    %276 = vmatprep.subr.mxu0 0.0
    %277 = vmatpush2.msra.mxu0 0.0
    %278 = vmatprep.subr.mxu0 0.0
    %279 = vmatpush2.msra.mxu0 0.0
    %280 = vmatprep.subr.mxu0 0.0
    %281 = vmatpush2.msra.mxu0 0.0
    %282 = vmatprep.subr.mxu0 0.0
    %283 = vmatpush2.msra.mxu0 0.0
    %284 = vmatprep.subr.mxu0 0.0
    %285 = vmatpush2.msra.mxu0 0.0
    %286 = vmatprep.subr.mxu0 0.0
    %287 = vmatpush2.msra.mxu0 0.0
    %288 = vmatprep.subr.mxu0 0.0
    %289 = vmatpush2.msra.mxu0 0.0
    %290 = vmatprep.subr.mxu0 0.0
    %291 = vmatpush2.msra.mxu0 0.0
    %292 = vmatprep.subr.mxu0 0.0
    %293 = vmatpush2.msra.mxu0 0.0
    %294 = vmatprep.subr.mxu0 0.0
    %295 = vmatpush2.msra.mxu0 0.0
    %296 = vmatprep.subr.mxu0 0.0
    %297 = vmatpush2.msra.mxu0 0.0
    %298 = vmatprep.subr.mxu0 0.0
    %299 = vmatpush2.msra.mxu0 0.0
    %300 = vmatprep.mubr.f32.mxu0 0.0
    %301 = vmatmul.mubr.f32.gmra.mxu0 %v234
    %v302 = vpop.f32.mrf.mxu0
    %v303 = vadd.f32 0.0, %v302
    %v304 = vpop.f32.mrf.mxu0
    %v305 = vadd.f32 0.0, %v304
    %306 = vdwg.mxu0
    %v307 = vmax.f32 %v303, 0.0
    %v308 = vmax.f32 %v305, 0.0
    %309 = vst [vmem:[#allocation8] sm:$0xf] %v52
    %310 = vst [vmem:[#allocation8 + $0x8] sm:$0xf] %v53
    %v313 = vrot.slane %v307, 4
    %v314 = vrot.slane %v308, 4
    %317 = vst [vmem:[#allocation8] sm:$0xf0] %v313
    %318 = vst [vmem:[#allocation8 + $0x8] sm:$0xf0] %v314
    %v321 = vrot.slane %v52, 4
    %v322 = vrot.slane %v53, 4
    %325 = vst [vmem:[#allocation8 + $0x10] sm:$0xf] %v321
    %326 = vst [vmem:[#allocation8 + $0x18] sm:$0xf] %v322
    %327 = vst [vmem:[#allocation8 + $0x10] sm:$0xf0] %v307
    %328 = vst [vmem:[#allocation8 + $0x18] sm:$0xf0] %v308
    // Predicated region
    $region26: #{tpu_custom_call.1} parent=1 // pred_check
      _
    $region27: #{tpu_custom_call.1} parent=1 // pred_check_branch
      %330 = sbr.rel (0) target = $region29
    $region28: #{tpu_custom_call.1} parent=1 // pred_region
      %s332 = ssub.s32 512, 512
      %333 = vsyncadd [#allocation4], %s332
      %s334 = sshll.u32 [#allocation8], 4
      %s335 = int_to_ptr.vmem [resolvable:$true] %s334
      %340 = dma.vmem_to_hbm [thread:$0]  %s335, 512, %s3, [#allocation4], 256, 256, 16
    $region29: #{tpu_custom_call.1} parent=1 // pred_fallthru
      _
    // Predicated region
    $region30: #{tpu_custom_call.1} parent=1 // pred_check
      _
    $region31: #{tpu_custom_call.1} parent=1 // pred_check_branch
      %342 = sbr.rel (0) target = $region33
    $region32: #{tpu_custom_call.1} parent=1 // pred_region
      %343 = dma.done [#allocation4], 512
    $region33: #{tpu_custom_call.1} parent=1 // pred_fallthru
      _
    %344 = vsyncpa [#allocation3], 1
    %345 = vsyncpa [#allocation6], 1
    %346 = vsyncpa [#allocation4], 1

</llo_original>
